<compile_context>
chip_gen: v5e
topology: v5e:2x2
jax: 0.10.0
libtpu: 0.0.40
codegen_flags: <defaults>
</compile_context>

<pallas_src>
import functools

import jax
import jax.numpy as jnp
from jax.experimental import pallas as pl
from jax.experimental.pallas import tpu as pltpu

LANES = 128
H1, H2 = 32, 64


def _round_up(n, m):
    return ((n + m - 1) // m) * m


def _cdiv(a, b):
    return -(-a // b)


def _layout(state_size):
    """Row offsets inside the packed (rows, 128) f32 parameter buffer.

    All offsets are compile-time constants (per state_size) and multiples of 8.
    """
    s_pad = _round_up(max(state_size, 8), 8)
    w2_off = s_pad
    w3_off = s_pad + H1
    b1_off = s_pad + H1 + H2
    b2_off = b1_off + 8
    b3_off = b2_off + 8
    rows = b3_off + 8
    return s_pad, w2_off, w3_off, b1_off, b2_off, b3_off, rows


def _mlp_kernel(action_size, s_pad, w2_off, w3_off, b1_off, b2_off, b3_off,
                x_ref, p_ref, o_ref):
    # x: (tile_b, s_pad) f32; padded feature columns (if any) are zero and hit
    # zero weight rows, so they contribute nothing.
    x = x_ref[...]

    w1 = p_ref[0:s_pad, :]                 # (s_pad, 128), cols >= 32 zero
    w2 = p_ref[w2_off:w2_off + H1, :]      # (32, 128),    cols >= 64 zero
    w3 = p_ref[w3_off:w3_off + H2, :]      # (64, 128),    cols >= action_size zero
    b1 = p_ref[b1_off:b1_off + 1, :]       # (1, 128)
    b2 = p_ref[b2_off:b2_off + 1, :]
    b3 = p_ref[b3_off:b3_off + 1, :]

    # fc1 + ReLU  (lanes >= 32 of h1 are exactly zero, then sliced away)
    h1 = jnp.maximum(jnp.dot(x, w1, preferred_element_type=jnp.float32) + b1, 0.0)
    h1 = h1[:, :H1]                        # (tile_b, 32)
    # fc2 + ReLU
    h2 = jnp.maximum(jnp.dot(h1, w2, preferred_element_type=jnp.float32) + b2, 0.0)
    h2 = h2[:, :H2]                        # (tile_b, 64)
    # fc3
    q = jnp.dot(h2, w3, preferred_element_type=jnp.float32) + b3   # (tile_b, 128)

    # Fused greedy action: first-occurrence argmax over the real action lanes.
    lane = jax.lax.broadcasted_iota(jnp.int32, q.shape, 1)
    valid = lane < action_size
    qm = jnp.where(valid, q, -jnp.inf)
    row_max = jnp.max(qm, axis=-1, keepdims=True)
    idx = jnp.where(qm >= row_max, lane, LANES)
    act = jnp.min(idx, axis=-1, keepdims=True)       # (tile_b, 1) int32
    act = jnp.where(act >= LANES, 0, act)            # all-NaN-row guard

    # Single lane-dense output: lane 127 carries the greedy action (as a small
    # integer encoded in f32); lanes [0, action_size) carry the Q values.
    out = jnp.where(lane == LANES - 1, act.astype(jnp.float32), q)
    o_ref[...] = out


def pack_params(params, state_size):
    """Pack pre-transposed (in, out) weights + biases into one lane-padded buffer."""
    s_pad, w2_off, w3_off, b1_off, b2_off, b3_off, rows = _layout(state_size)
    w1, b1 = params["w1"], params["b1"]
    w2, b2 = params["w2"], params["b2"]
    w3, b3 = params["w3"], params["b3"]
    buf = jnp.zeros((rows, LANES), jnp.float32)
    buf = buf.at[0:w1.shape[0], :w1.shape[1]].set(w1.astype(jnp.float32))
    buf = buf.at[w2_off:w2_off + H1, :H2].set(w2.astype(jnp.float32))
    buf = buf.at[w3_off:w3_off + H2, :w3.shape[1]].set(w3.astype(jnp.float32))
    buf = buf.at[b1_off, :H1].set(b1.reshape(-1).astype(jnp.float32))
    buf = buf.at[b2_off, :H2].set(b2.reshape(-1).astype(jnp.float32))
    buf = buf.at[b3_off, :b3.shape[-1]].set(b3.reshape(-1).astype(jnp.float32))
    return buf


def dqn_forward(x, packed_params, state_size, action_size, *,
                max_block_rows=2048, return_padded=False):
    """Returns (q_values (B, action_size) f32, greedy_actions (B,) int32).

    With return_padded=True the raw (b_pad, 128) kernel output is returned
    instead (lane 127 = greedy action), letting a consumer skip the post-kernel
    slice copies.
    """
    B, S = x.shape
    s_pad, w2_off, w3_off, b1_off, b2_off, b3_off, rows = _layout(state_size)
    assert S == state_size and s_pad <= LANES and action_size < LANES
    assert packed_params.shape == (rows, LANES)

    # Batch tiling: >=2 grid steps when B >= 16 so both v7x TensorCores get
    # work; large tiles (up to 2048 rows) keep per-step overhead negligible on
    # single-TC v5e/v6e.  tile_b derived from cdiv(B, num_blocks) so at most 7
    # dead padding rows.
    min_blocks = 2 if B >= 16 else 1
    num_blocks = max(min_blocks, _cdiv(B, max_block_rows))
    tile_b = _round_up(_cdiv(max(B, 8), num_blocks), 8)
    b_pad = tile_b * num_blocks

    # Only the (cheap) row / feature-to-multiple-of-8 padding is done here; no
    # 128-lane inflation of x.
    xf = x.astype(jnp.float32)
    if (b_pad, s_pad) != (B, S):
        xp = jnp.zeros((b_pad, s_pad), jnp.float32).at[:B, :S].set(xf)
    else:
        xp = xf

    # Honest cost estimate of the padded work actually executed.
    flops = 2 * b_pad * LANES * (s_pad + H1 + H2)
    bytes_accessed = 4 * (b_pad * s_pad + rows * LANES + b_pad * LANES)

    kernel = functools.partial(_mlp_kernel, action_size, s_pad,
                               w2_off, w3_off, b1_off, b2_off, b3_off)

    out = pl.pallas_call(
        kernel,
        out_shape=jax.ShapeDtypeStruct((b_pad, LANES), jnp.float32),
        grid=(num_blocks,),
        in_specs=[
            pl.BlockSpec((tile_b, s_pad), lambda i: (i, 0)),   # x tile
            pl.BlockSpec((rows, LANES), lambda i: (0, 0)),     # packed params
        ],
        out_specs=pl.BlockSpec((tile_b, LANES), lambda i: (i, 0)),
        compiler_params=pltpu.CompilerParams(
            dimension_semantics=("parallel",)),
        cost_estimate=pl.CostEstimate(
            flops=flops, transcendentals=0, bytes_accessed=bytes_accessed),
    )(xp, packed_params)

    if return_padded:
        return out
    q = out[:B, :action_size]
    actions = out[:B, LANES - 1].astype(jnp.int32)
    return q, actions


def init_params(key, state_size, action_size):
    """PyTorch-Linear-style U(-1/sqrt(fan_in), 1/sqrt(fan_in)) init.
    Weights are stored pre-transposed as (in_features, out_features).
    # TODO(synk): torch.manual_seed reproduction is not possible with JAX PRNG;
    # initialization distribution matches but exact values differ.
    """
    dims = [(state_size, H1), (H1, H2), (H2, action_size)]
    params = {}
    for i, (fan_in, fan_out) in enumerate(dims, start=1):
        key, kw, kb = jax.random.split(key, 3)
        bound = 1.0 / jnp.sqrt(jnp.float32(fan_in))
        params[f"w{i}"] = jax.random.uniform(
            kw, (fan_in, fan_out), jnp.float32, minval=-bound, maxval=bound)
        params[f"b{i}"] = jax.random.uniform(
            kb, (1, fan_out), jnp.float32, minval=-bound, maxval=bound)
    return params


def reference_forward(x, params):
    h1 = jnp.maximum(x @ params["w1"] + params["b1"], 0.0)
    h2 = jnp.maximum(h1 @ params["w2"] + params["b2"], 0.0)
    return h2 @ params["w3"] + params["b3"]


if __name__ == "__main__":
    state_size = 8
    action_size = 4
    batch = 8

    key = jax.random.PRNGKey(0)
    key, kx = jax.random.split(key)
    x = jax.random.normal(kx, (batch, state_size), jnp.float32)
    params = init_params(key, state_size, action_size)
    packed = pack_params(params, state_size)

    q, actions = dqn_forward(x, packed, state_size, action_size)
    q = jax.block_until_ready(q)
    actions = jax.block_until_ready(actions)

    ref_q = reference_forward(x, params)
    ref_actions = jnp.argmax(ref_q, axis=-1).astype(jnp.int32)

    assert q.shape == (batch, action_size)
    assert actions.shape == (batch,)
    assert jnp.allclose(q, ref_q, atol=1e-4, rtol=1e-4), "Q mismatch vs JAX reference"
    assert jnp.array_equal(actions, ref_actions), "argmax mismatch vs JAX reference"

    print("KERNEL_OK")
</pallas_src>

<mosaic_0001>
module attributes {stable_mosaic.version = 11 : i64} {
  func.func @_mlp_kernel(%arg0: i32, %arg1: memref<8x8xf32, #tpu.memory_space<vmem>>, %arg2: memref<128x128xf32, #tpu.memory_space<vmem>>, %arg3: memref<8x128xf32, #tpu.memory_space<vmem>>) attributes {dimension_semantics = [#tpu.dimension_semantics<parallel>], iteration_bounds = array<i64: 1>, scalar_prefetch = 0 : i64, scratch_operands = 0 : i64, tpu.core_type = #tpu.core_type<tc>, window_params = [{transform_indices = @transform_0, window_bounds = array<i64: 8, 8>}, {pipeline_mode = #tpu.pipeline_mode<synchronous>, transform_indices = @transform_1, window_bounds = array<i64: 128, 128>}, {transform_indices = @transform_2, window_bounds = array<i64: 8, 128>}]} {
    %c0 = arith.constant 0 : index
    %c0_0 = arith.constant 0 : index
    %0 = vector.load %arg1[%c0, %c0_0] : memref<8x8xf32, #tpu.memory_space<vmem>>, vector<8x8xf32>
    %c0_1 = arith.constant 0 : index
    %c0_2 = arith.constant 0 : index
    %1 = vector.load %arg2[%c0_1, %c0_2] : memref<128x128xf32, #tpu.memory_space<vmem>>, vector<8x128xf32>
    %c8 = arith.constant 8 : index
    %c0_3 = arith.constant 0 : index
    %2 = vector.load %arg2[%c8, %c0_3] : memref<128x128xf32, #tpu.memory_space<vmem>>, vector<32x128xf32>
    %c40 = arith.constant 40 : index
    %c0_4 = arith.constant 0 : index
    %3 = vector.load %arg2[%c40, %c0_4] : memref<128x128xf32, #tpu.memory_space<vmem>>, vector<64x128xf32>
    %c104 = arith.constant 104 : index
    %c0_5 = arith.constant 0 : index
    %4 = vector.load %arg2[%c104, %c0_5] : memref<128x128xf32, #tpu.memory_space<vmem>>, vector<1x128xf32>
    %c112 = arith.constant 112 : index
    %c0_6 = arith.constant 0 : index
    %5 = vector.load %arg2[%c112, %c0_6] : memref<128x128xf32, #tpu.memory_space<vmem>>, vector<1x128xf32>
    %c120 = arith.constant 120 : index
    %c0_7 = arith.constant 0 : index
    %6 = vector.load %arg2[%c120, %c0_7] : memref<128x128xf32, #tpu.memory_space<vmem>>, vector<1x128xf32>
    %cst = arith.constant dense<0.000000e+00> : vector<8x128xf32>
    %7 = tpu.matmul %0, %1, %cst {dimension_numbers = #tpu.dot_dimension_numbers<[1], [0], [0], [1], [0, 0, 1, 1], [], []>} : vector<8x8xf32>, vector<8x128xf32>, vector<8x128xf32> -> vector<8x128xf32>
    %8 = vector.broadcast %4 : vector<1x128xf32> to vector<8x128xf32>
    %9 = arith.addf %7, %8 : vector<8x128xf32>
    %cst_8 = arith.constant 0.000000e+00 : f32
    %10 = vector.broadcast %cst_8 : f32 to vector<8x128xf32>
    %11 = arith.maximumf %9, %10 : vector<8x128xf32>
    %12 = vector.extract_strided_slice %11 {offsets = [0, 0], sizes = [8, 32], strides = [1, 1]} : vector<8x128xf32> to vector<8x32xf32>
    %cst_9 = arith.constant dense<0.000000e+00> : vector<8x128xf32>
    %13 = tpu.matmul %12, %2, %cst_9 {dimension_numbers = #tpu.dot_dimension_numbers<[1], [0], [0], [1], [0, 0, 1, 1], [], []>} : vector<8x32xf32>, vector<32x128xf32>, vector<8x128xf32> -> vector<8x128xf32>
    %14 = vector.broadcast %5 : vector<1x128xf32> to vector<8x128xf32>
    %15 = arith.addf %13, %14 : vector<8x128xf32>
    %cst_10 = arith.constant 0.000000e+00 : f32
    %16 = vector.broadcast %cst_10 : f32 to vector<8x128xf32>
    %17 = arith.maximumf %15, %16 : vector<8x128xf32>
    %18 = vector.extract_strided_slice %17 {offsets = [0, 0], sizes = [8, 64], strides = [1, 1]} : vector<8x128xf32> to vector<8x64xf32>
    %cst_11 = arith.constant dense<0.000000e+00> : vector<8x128xf32>
    %19 = tpu.matmul %18, %3, %cst_11 {dimension_numbers = #tpu.dot_dimension_numbers<[1], [0], [0], [1], [0, 0, 1, 1], [], []>} : vector<8x64xf32>, vector<64x128xf32>, vector<8x128xf32> -> vector<8x128xf32>
    %20 = vector.broadcast %6 : vector<1x128xf32> to vector<8x128xf32>
    %21 = arith.addf %19, %20 : vector<8x128xf32>
    %22 = tpu.iota {dimensions = array<i32: 1>} : vector<8x128xi32>
    %c4_i32 = arith.constant 4 : i32
    %23 = vector.broadcast %c4_i32 : i32 to vector<8x128xi32>
    %24 = arith.cmpi slt, %22, %23 : vector<8x128xi32>
    %cst_12 = arith.constant 0xFF800000 : f32
    %25 = vector.broadcast %cst_12 : f32 to vector<8x128xf32>
    %26 = arith.select %24, %21, %25 : vector<8x128xi1>, vector<8x128xf32>
    %cst_13 = arith.constant dense<0xFF800000> : vector<8xf32>
    %27 = vector.multi_reduction <maximumf>, %26, %cst_13 [1] : vector<8x128xf32> to vector<8xf32>
    %28 = vector.shape_cast %27 : vector<8xf32> to vector<8x1xf32>
    %29 = vector.broadcast %28 : vector<8x1xf32> to vector<8x128xf32>
    %30 = arith.cmpf oge, %26, %29 : vector<8x128xf32>
    %c128_i32 = arith.constant 128 : i32
    %31 = vector.broadcast %c128_i32 : i32 to vector<8x128xi32>
    %32 = arith.select %30, %22, %31 : vector<8x128xi1>, vector<8x128xi32>
    %cst_14 = arith.constant dense<2147483647> : vector<8xi32>
    %33 = vector.multi_reduction <minsi>, %32, %cst_14 [1] : vector<8x128xi32> to vector<8xi32>
    %34 = vector.shape_cast %33 : vector<8xi32> to vector<8x1xi32>
    %c128_i32_15 = arith.constant 128 : i32
    %35 = vector.broadcast %c128_i32_15 : i32 to vector<8x1xi32>
    %36 = arith.cmpi sge, %34, %35 : vector<8x1xi32>
    %c0_i32 = arith.constant 0 : i32
    %37 = vector.broadcast %c0_i32 : i32 to vector<8x1xi32>
    %38 = arith.select %36, %37, %34 : vector<8x1xi1>, vector<8x1xi32>
    %c127_i32 = arith.constant 127 : i32
    %39 = vector.broadcast %c127_i32 : i32 to vector<8x128xi32>
    %40 = arith.cmpi eq, %22, %39 : vector<8x128xi32>
    %41 = arith.sitofp %38 : vector<8x1xi32> to vector<8x1xf32>
    %42 = vector.shape_cast %41 : vector<8x1xf32> to vector<8x1xf32>
    %43 = vector.broadcast %42 : vector<8x1xf32> to vector<8x128xf32>
    %44 = arith.select %40, %43, %21 : vector<8x128xi1>, vector<8x128xf32>
    %c0_16 = arith.constant 0 : index
    %c0_17 = arith.constant 0 : index
    %45 = vector.load %arg3[%c0_16, %c0_17] : memref<8x128xf32, #tpu.memory_space<vmem>>, vector<8x128xf32>
    tpu.vector_store %arg3[%c0_16, %c0_17], %44 {strides = array<i32>} : memref<8x128xf32, #tpu.memory_space<vmem>>, vector<8x128xf32>,
    return
  }
  func.func @transform_0(%arg0: i32) -> (i32, i32) {
    %c0_i32 = arith.constant 0 : i32
    %c0_i32_0 = arith.constant 0 : i32
    return %arg0, %c0_i32 : i32, i32
  }
  func.func @transform_1(%arg0: i32) -> (i32, i32) {
    %c0_i32 = arith.constant 0 : i32
    %c0_i32_0 = arith.constant 0 : i32
    %c0_i32_1 = arith.constant 0 : i32
    return %c0_i32, %c0_i32_0 : i32, i32
  }
  func.func @transform_2(%arg0: i32) -> (i32, i32) {
    %c0_i32 = arith.constant 0 : i32
    %c0_i32_0 = arith.constant 0 : i32
    return %arg0, %c0_i32 : i32, i32
  }
}

</mosaic_0001>

<llo_original>
// kernel: tpu_custom_call.1
$region0: #{tpu_custom_call.1}
  #allocation0 [shape = 'u32[]', space=smem, size = 0x4, offset = 0x4, fixed_abs, tag = 'smem constant byte address 0x4 - core index']
  #allocation1 [shape = 'u32[72,128]{1,0:T(1,128)}', space=vmem, size = 0x9000, scoped, tag = 'internal scratch']
  %s0 = inlined_call_operand.hbm [shape: f32[8,8], index: 0, kind: input, shape index: {}]
  %s1 = inlined_call_operand.hbm [shape: f32[128,128], index: 1, kind: input, shape index: {}]
  %s2 = inlined_call_operand.hbm [shape: f32[8,128], index: 2, kind: output, shape index: {}]
  %s3 = sld [smem:[#allocation0]]
  $region26: #{tpu_custom_call.1} parent=0
    _
  %s5 = ssub.s32 1, %s3
  %s6 = scalar_select 0, %s5, %s3
  $region1: #{tpu_custom_call.1} parent=0
    #allocation2 [shape = 'u8[4096]{0}', space=vmem, size = 0x1000, scoped, tag = 'input window, operand 0, single buffered']
    #allocation3 [shape = 's32[1]{0}', space=sflag, size = 0x4, scoped, tag = 'scoped memory for tpu_custom_call.1']
    #allocation4 [shape = 's32[1]{0}', space=sflag, size = 0x4, scoped, tag = 'scoped memory for tpu_custom_call.1']
    #allocation5 [shape = 'u8[65536]{0}', space=vmem, size = 0x10000, scoped, tag = 'input window, operand 1, single buffered']
    #allocation6 [shape = 's32[1]{0}', space=sflag, size = 0x4, scoped, tag = 'scoped memory for tpu_custom_call.1']
    #allocation7 [shape = 'u8[4096]{0}', space=vmem, size = 0x1000, scoped, tag = 'output window, operand 0, single buffered']
    %7 = vsyncpa [#allocation3], 0
    %8 = vsyncpa [#allocation6], 0
    %9 = vsyncpa [#allocation4], 0
    // Predicated region
    $region2: #{tpu_custom_call.1} parent=1 // pred_check
      _
    $region3: #{tpu_custom_call.1} parent=1 // pred_check_branch
      %11 = sbr.rel (0) target = $region5
    $region4: #{tpu_custom_call.1} parent=1 // pred_region
      %13 = vsyncadd [#allocation3], 0
      %s15 = sshll.u32 %s0, 4
      %s16 = int_to_ptr.hbm [resolvable:$true] %s15
      %s17 = sshll.u32 [#allocation2], 4
      %s18 = int_to_ptr.vmem [resolvable:$true] %s17
      %20 = dma.hbm_to_vmem [thread:$0]  %s16, 128, %s18, [#allocation3]
    $region5: #{tpu_custom_call.1} parent=1 // pred_fallthru
      _
    // Predicated region
    $region6: #{tpu_custom_call.1} parent=1 // pred_check
      _
    $region7: #{tpu_custom_call.1} parent=1 // pred_check_branch
      %22 = sbr.rel (0) target = $region9
    $region8: #{tpu_custom_call.1} parent=1 // pred_region
      %24 = vsyncadd [#allocation6], 0
      %s25 = sshll.u32 %s1, 4
      %s26 = int_to_ptr.hbm [resolvable:$true] %s25
      %s27 = sshll.u32 [#allocation5], 4
      %s28 = int_to_ptr.vmem [resolvable:$true] %s27
      %33 = dma.hbm_to_vmem [thread:$0]  %s26, 2048, %s28, [#allocation6], 128, 128, 8
    $region9: #{tpu_custom_call.1} parent=1 // pred_fallthru
      _
    // Predicated region
    $region10: #{tpu_custom_call.1} parent=1 // pred_check
      _
    $region11: #{tpu_custom_call.1} parent=1 // pred_check_branch
      %35 = sbr.rel (0) target = $region13
    $region12: #{tpu_custom_call.1} parent=1 // pred_region
      %37 = dma.done [#allocation3], 128
    $region13: #{tpu_custom_call.1} parent=1 // pred_fallthru
      _
    // Predicated region
    $region14: #{tpu_custom_call.1} parent=1 // pred_check
      _
    $region15: #{tpu_custom_call.1} parent=1 // pred_check_branch
      %39 = sbr.rel (0) target = $region17
    $region16: #{tpu_custom_call.1} parent=1 // pred_region
      %41 = dma.done [#allocation6], 2048
    $region17: #{tpu_custom_call.1} parent=1 // pred_fallthru
      _
    %v42 = vld [vmem:[#allocation2] sm:$0xff]
    %v43 = vld [vmem:[#allocation5] sm:$0xff]
    %v44 = vld [vmem:[#allocation5 + $0x8] sm:$0xff]
    %v45 = vld [vmem:[#allocation5 + $0x10] sm:$0xff]
    %v46 = vld [vmem:[#allocation5 + $0x18] sm:$0xff]
    %v47 = vld [vmem:[#allocation5 + $0x20] sm:$0xff]
    %v48 = vld [vmem:[#allocation5 + $0x28] sm:$0xff]
    %v49 = vld [vmem:[#allocation5 + $0x30] sm:$0xff]
    %v50 = vld [vmem:[#allocation5 + $0x38] sm:$0xff]
    %v51 = vld [vmem:[#allocation5 + $0x40] sm:$0xff]
    %v52 = vld [vmem:[#allocation5 + $0x48] sm:$0xff]
    %v53 = vld [vmem:[#allocation5 + $0x50] sm:$0xff]
    %v54 = vld [vmem:[#allocation5 + $0x58] sm:$0xff]
    %v55 = vld [vmem:[#allocation5 + $0x60] sm:$0xff]
    %v56 = vld [vmem:[#allocation5 + $0x68] sm:$0x1]
    %v57 = vld [vmem:[#allocation5 + $0x70] sm:$0x1]
    %v58 = vld [vmem:[#allocation5 + $0x78] sm:$0x1]
    %v59 = vperm.slane %v56, 0
    %vm60 = vcmask 64512
    %v62 = vsel %vm60, %v42, 0
    %64 = vmatpush.msra.mxu0 0.0
    %65 = vmatpush.msra.mxu0 0.0
    %66 = vmatpush.msra.mxu0 0.0
    %67 = vmatpush.msra.mxu0 0.0
    %68 = vmatpush.msra.mxu0 0.0
    %69 = vmatpush.msra.mxu0 0.0
    %70 = vmatpush.msra.mxu0 0.0
    %71 = vmatpush.msra.mxu0 0.0
    %72 = vmatpush.msra.mxu0 0.0
    %73 = vmatpush.msra.mxu0 0.0
    %74 = vmatpush.msra.mxu0 0.0
    %75 = vmatpush.msra.mxu0 0.0
    %76 = vmatpush.msra.mxu0 0.0
    %77 = vmatpush.msra.mxu0 0.0
    %78 = vmatpush.msra.mxu0 0.0
    %79 = vmatpush.msra.mxu0 %v43
    %80 = vmatmul.f32.gmra.mxu0 %v62
    %v81 = vpop.f32.mrf.mxu0
    %v82 = vadd.f32 %v59, %v81
    %83 = vdwg.mxu0
    %v84 = vmax.f32 %v82, 0.0
    %v85 = vperm.slane %v57, 0
    %vm86 = vcmask 261120
    %v88 = vsel %vm86, %v84, 0
    %90 = vmatpush.msra.mxu0 0.0
    %91 = vmatpush.msra.mxu0 0.0
    %92 = vmatpush.msra.mxu0 0.0
    %93 = vmatpush.msra.mxu0 0.0
    %94 = vmatpush.msra.mxu0 0.0
    %95 = vmatpush.msra.mxu0 0.0
    %96 = vmatpush.msra.mxu0 0.0
    %97 = vmatpush.msra.mxu0 0.0
    %98 = vmatpush.msra.mxu0 0.0
    %99 = vmatpush.msra.mxu0 0.0
    %100 = vmatpush.msra.mxu0 0.0
    %101 = vmatpush.msra.mxu0 0.0
    %102 = vmatpush.msra.mxu0 %v47
    %103 = vmatpush.msra.mxu0 %v46
    %104 = vmatpush.msra.mxu0 %v45
    %105 = vmatpush.msra.mxu0 %v44
    %106 = vmatmul.f32.gmra.mxu0 %v88
    %v107 = vpop.f32.mrf.mxu0
    %v108 = vadd.f32 %v85, %v107
    %109 = vdwg.mxu0
    %v110 = vmax.f32 %v108, 0.0
    %v111 = vperm.slane %v58, 0
    %vm112 = vcmask 523264
    %v114 = vsel %vm112, %v110, 0
    %116 = vmatpush.msra.mxu0 0.0
    %117 = vmatpush.msra.mxu0 0.0
    %118 = vmatpush.msra.mxu0 0.0
    %119 = vmatpush.msra.mxu0 0.0
    %120 = vmatpush.msra.mxu0 0.0
    %121 = vmatpush.msra.mxu0 0.0
    %122 = vmatpush.msra.mxu0 0.0
    %123 = vmatpush.msra.mxu0 0.0
    %124 = vmatpush.msra.mxu0 %v55
    %125 = vmatpush.msra.mxu0 %v54
    %126 = vmatpush.msra.mxu0 %v53
    %127 = vmatpush.msra.mxu0 %v52
    %128 = vmatpush.msra.mxu0 %v51
    %129 = vmatpush.msra.mxu0 %v50
    %130 = vmatpush.msra.mxu0 %v49
    %131 = vmatpush.msra.mxu0 %v48
    %132 = vmatmul.f32.gmra.mxu0 %v114
    %v133 = vpop.f32.mrf.mxu0
    %v134 = vadd.f32 %v111, %v133
    %135 = vdwg.mxu0
    %v136 = vlaneseq
    %v137 = vand.u32 %v136, 127
    %vm138 = vcmp.lt.s32.totalorder %v137, 4
    %v139 = vsel %vm138, %v134, -inf
    %140 = vmax.xlane.f32.xlu0 %v139
    %v141 = vpop.xlane.xlu0 %140
    %vm142 = vcmp.ge.f32.partialorder %v139, %v141
    %v143 = vsel %vm142, %v137, 128
    %v144 = vand.u32 %v143, 65535
    %v145 = vshra.s32 %v143, 16
    %v146 = vcvt.s32.f32 %v144
    %v147 = vcvt.s32.f32 %v145
    %148 = vmin.xlane.f32.xlu0 %v147
    %v149 = vpop.xlane.xlu0 %148
    %vm150 = vcmp.eq.f32.partialorder %v147, %v149
    %v151 = vsel %vm150, %v146, inf
    %152 = vmin.xlane.f32.xlu0 %v151
    %v153 = vpop.xlane.xlu0 %152
    %v154 = vcvt.f32.s32 %v153
    %v155 = vcvt.f32.s32 %v149
    %v156 = vshll.u32 %v155, 16
    %v157 = vadd.s32 %v156, %v154
    %vm158 = vcmp.ge.s32.totalorder %v157, 128
    %v159 = vsel %vm158, 0, %v157
    %vm160 = vcmp.eq.s32.totalorder %v137, 127
    %v161 = vcvt.s32.f32 %v159
    %v162 = vsel %vm160, %v161, %v134
    %163 = vst [vmem:[#allocation7] sm:$0xff] %v162
    // Predicated region
    $region18: #{tpu_custom_call.1} parent=1 // pred_check
      _
    $region19: #{tpu_custom_call.1} parent=1 // pred_check_branch
      %165 = sbr.rel (0) target = $region21
    $region20: #{tpu_custom_call.1} parent=1 // pred_region
      %167 = vsyncadd [#allocation4], 0
      %s169 = sshll.u32 [#allocation7], 4
      %s170 = int_to_ptr.vmem [resolvable:$true] %s169
      %s171 = sshll.u32 %s2, 4
      %s172 = int_to_ptr.hbm [resolvable:$true] %s171
      %174 = dma.vmem_to_hbm [thread:$0]  %s170, 128, %s172, [#allocation4]
    $region21: #{tpu_custom_call.1} parent=1 // pred_fallthru
      _
    // Predicated region
    $region22: #{tpu_custom_call.1} parent=1 // pred_check
      _
    $region23: #{tpu_custom_call.1} parent=1 // pred_check_branch
      %176 = sbr.rel (0) target = $region25
    $region24: #{tpu_custom_call.1} parent=1 // pred_region
      %178 = dma.done [#allocation4], 128
    $region25: #{tpu_custom_call.1} parent=1 // pred_fallthru
      _
    %179 = vsyncpa [#allocation3], 1
    %180 = vsyncpa [#allocation6], 1
    %181 = vsyncpa [#allocation4], 1

</llo_original>
